<compile_context>
chip_gen: v5e
topology: v5e:2x2
jax: 0.10.0
libtpu: 0.0.40
codegen_flags: <defaults>
</compile_context>

<pallas_src>
import math

import numpy as np

import jax
import jax.numpy as jnp
from jax.experimental import pallas as pl
from jax.experimental.pallas import tpu as pltpu


# ---------------------------------------------------------------------------
# Interpolation matrices (host-side, cached as constants)
# ---------------------------------------------------------------------------
def _interp_matrix_np(out_size: int, in_size: int) -> np.ndarray:
    """align_corners=True bilinear interpolation matrix (out_size, in_size)."""
    a = np.zeros((out_size, in_size), np.float32)
    if out_size == 1:
        src = np.zeros((1,), np.float64)
    else:
        src = np.arange(out_size, dtype=np.float64) * (
            (in_size - 1) / (out_size - 1)
        )
    i0 = np.clip(np.floor(src).astype(np.int64), 0, in_size - 1)
    i1 = np.clip(i0 + 1, 0, in_size - 1)
    w1 = (src - i0).astype(np.float32)
    w0 = (1.0 - w1).astype(np.float32)
    rows = np.arange(out_size)
    np.add.at(a, (rows, i0), w0)
    np.add.at(a, (rows, i1), w1)
    return a


def _ceil_to(x: int, m: int) -> int:
    return -(-int(x) // int(m)) * int(m)


# ---------------------------------------------------------------------------
# Pallas kernels
# ---------------------------------------------------------------------------
def _spatial_neck_kernel(x_ref, kt_ref, o_ref):
    # x_ref : (T, Hi*Wi)       tile of flattened B*C maps
    # kt_ref: (Hi*Wi, Ho*Wo)   kron(A_h, A_w)^T, f32, single-buffered
    # o_ref : (T, Ho*Wo)       lane-dense output
    x = x_ref[...].astype(jnp.float32)      # keep f32 weights (bit parity)
    o_ref[...] = jnp.dot(
        x, kt_ref[...], preferred_element_type=jnp.float32
    ).astype(o_ref.dtype)


def _token_neck_kernel(x_ref, kt_ref, o_ref):
    # x_ref : (1, 1+S*S, Ct)   ViT tokens incl. CLS, channels-last (lane-dense C)
    # kt_ref: (1+S*S, Ho*Wo)   kron^T with an all-zero CLS row -> CLS dropped
    #                          for free inside the contraction
    # o_ref : (1, Ct, Ho*Wo)   NCHW-flattened output (lane-dense)
    x = x_ref[0].astype(jnp.float32)        # (1+S*S, Ct)
    # y[c, p] = sum_h x[h, c] * kt[h, p] — CLS-drop + NCHW transpose + resize
    # fused into a single transposed-LHS ("TN") MXU contraction.
    y = jax.lax.dot_general(
        x, kt_ref[...], (((0,), (0,)), ((), ())),
        preferred_element_type=jnp.float32,
    )
    o_ref[0] = y.astype(o_ref.dtype)


# ---------------------------------------------------------------------------
# VMEM accounting & tiling helpers
# ---------------------------------------------------------------------------
def _vmem_limit_bytes() -> int:
    """Scoped-VMEM limit by generation.

    v5e/v6e (128 MiB physical) -> up to 96 MiB scoped (large K^T / output
    blocks fit with deep buffering); v7x (64 MiB physical) -> 32 MiB."""
    try:
        cap = int(pltpu.get_tpu_info().vmem_capacity_bytes)
    except Exception:  # pragma: no cover - conservative fallback
        cap = 64 * 1024 * 1024
    if cap > 64 * 1024 * 1024:
        return int(min(cap * 3 // 4, 96 * 1024 * 1024))
    return int(cap // 2)


def _spatial_vmem_per_row(hw: int, p: int, in_itemsize: int, out_itemsize: int) -> int:
    """VMEM bytes per leading-dim row of the spatial kernel (with padding)."""
    hw_pad = _ceil_to(hw, 128)            # lane padding of the K dim
    p_pad = _ceil_to(p, 128)              # lane padding of the output dim
    b = hw_pad * in_itemsize * 2          # x tile, double-buffered
    b += p_pad * out_itemsize * 2         # output tile, double-buffered
    b += p_pad * 4                        # f32 dot result before the store cast
    if in_itemsize < 4:
        b += hw_pad * 4                   # in-kernel f32 upcast of x
    return b


def _token_vmem_bytes(n: int, c_tile: int, p: int,
                      in_itemsize: int, out_itemsize: int) -> int:
    """VMEM bytes for one token-kernel block set (with padding)."""
    n_pad = _ceil_to(n, 8)
    c_lane = _ceil_to(c_tile, 128)
    c_sub = _ceil_to(c_tile, 8)
    p_pad = _ceil_to(p, 128)
    b = n_pad * c_lane * in_itemsize * 2   # x block, double-buffered
    b += n_pad * c_lane * 4                # f32 upcast / transpose staging
    b += n_pad * p_pad * 4                 # kt, single-buffered (Buffered(1))
    b += c_sub * p_pad * out_itemsize * 2  # out block, double-buffered
    b += c_sub * p_pad * 4                 # f32 dot result before cast
    return b


def _pick_tile(bc: int, per_row_bytes: int, fixed_bytes: int, vmem_limit: int,
               min_steps: int = 4, max_tile: int = 512) -> int:
    """Leading-dim tile for the spatial kernel.

    128-aligned, fits the (accurately accounted) VMEM budget, capped at 512
    rows, and for big workloads forces >= min_steps evenly sized grid steps so
    v7x megacore stays balanced and each core keeps DMA/compute overlap."""
    budget = max(int(vmem_limit * 0.85) - fixed_bytes, 1 << 20)
    cap = min(budget // max(per_row_bytes, 1), max_tile)
    if bc >= min_steps * 128:
        cap = min(cap, bc // min_steps)
    if bc <= max(cap, 8):
        return bc                          # small workload: one block
    if cap >= 128:
        tile, step = max(128, (cap // 128) * 128), 128
    else:
        tile, step = max(8, (cap // 8) * 8), 8
    for t in range(tile, 0, -step):        # prefer exact division (no tail)
        if bc % t == 0:
            return t
    for t in range((tile // 8) * 8, 0, -8):
        if bc % t == 0:
            return t
    return tile                            # cdiv tail handled by Pallas


# ---------------------------------------------------------------------------
# Necker forward
# ---------------------------------------------------------------------------
class NeckerPallas:
    """JAX/Pallas equivalent of models/Necker.py::Necker (parameter-free).

    `token_size` plays the role of clip_model.token_size."""

    def __init__(self, token_size):
        self.token_size = [int(s) for s in token_size]
        self.target = int(max(self.token_size))
        self._vmem_limit = _vmem_limit_bytes()
        self._kron_cache = {}

    # -- cached K^T = kron(A_h, A_w)^T (always f32: no weight quantization) --
    def _kron_t(self, hi, wi, ho, wo, cls_row=False):
        key = (hi, wi, ho, wo, bool(cls_row))
        if key not in self._kron_cache:
            kt = np.kron(
                _interp_matrix_np(ho, hi), _interp_matrix_np(wo, wi)
            ).T  # (hi*wi, ho*wo)
            if cls_row:  # zero row for the CLS token -> dropped in the matmul
                kt = np.concatenate(
                    [np.zeros((1, kt.shape[1]), kt.dtype), kt], axis=0
                )
            self._kron_cache[key] = jnp.asarray(kt, dtype=jnp.float32)
        return self._kron_cache[key]

    # -- channel tile for the token kernel ------------------------------------
    def _pick_c_tile(self, B, C, N, P, itemsize):
        limit = int(self._vmem_limit * 0.85)

        def fits(ct):
            return _token_vmem_bytes(N, ct, P, itemsize, itemsize) <= limit

        cands = [ct for ct in (256, 192, 128) if C % ct == 0]
        if not cands:
            return C                        # small C (e.g. demo): full extent
        fitting = [ct for ct in cands if fits(ct)] or [cands[-1]]
        # prefer >=4 even grid steps (v7x megacore balance), then >=4, then even
        for ok in (lambda s: s >= 4 and s % 2 == 0,
                   lambda s: s >= 4,
                   lambda s: s % 2 == 0):
            for ct in fitting:
                if ok(B * (C // ct)):
                    return ct
        return fitting[0]

    # -- (B, 1+S*S, C) transformer tokens ------------------------------------
    def _resize_tokens(self, token):
        B, N, C = token.shape
        s = int(math.isqrt(N - 1))
        assert s * s == N - 1, (
            "Necker expects (B, 1 + S*S, C) tokens with a leading CLS token")
        ho = wo = self.target
        P = ho * wo
        kt = self._kron_t(s, s, ho, wo, cls_row=True)

        itemsize = token.dtype.itemsize
        c_tile = self._pick_c_tile(B, C, N, P, itemsize)
        grid = (B, C // c_tile)

        cost = pl.CostEstimate(
            flops=2 * B * C * N * P,
            transcendentals=0,
            bytes_accessed=B * N * C * itemsize + B * C * P * itemsize + N * P * 4,
        )
        out = pl.pallas_call(
            _token_neck_kernel,
            out_shape=jax.ShapeDtypeStruct((B, C, P), token.dtype),
            grid_spec=pltpu.PrefetchScalarGridSpec(
                num_scalar_prefetch=0,
                grid=grid,
                in_specs=[
                    pl.BlockSpec((1, N, c_tile), lambda b, cj: (b, 0, cj)),
                    # constant operand: single-buffered -> halves its VMEM use
                    pl.BlockSpec((N, P), lambda b, cj: (0, 0),
                                 pipeline_mode=pl.Buffered(1)),
                ],
                out_specs=pl.BlockSpec((1, c_tile, P), lambda b, cj: (b, cj, 0)),
            ),
            compiler_params=pltpu.CompilerParams(
                dimension_semantics=("parallel", "parallel"),
                vmem_limit_bytes=self._vmem_limit,
            ),
            cost_estimate=cost,
        )(token, kt)
        return out.reshape(B, C, ho, wo)

    # -- (B, C, H, W) spatial maps --------------------------------------------
    def _resize_spatial(self, x):
        B, C, Hi, Wi = x.shape
        ho = wo = self.target
        if (Hi, Wi) == (ho, wo):
            # pass-through: no kernel launch, no HBM round trip
            return x
        P = ho * wo
        HW = Hi * Wi
        kt = self._kron_t(Hi, Wi, ho, wo)

        bc = B * C
        x_flat = x.reshape(bc, HW)
        itemsize = x.dtype.itemsize
        per_row = _spatial_vmem_per_row(HW, P, itemsize, itemsize)
        kt_bytes = _ceil_to(HW, 8) * _ceil_to(P, 128) * 4   # single-buffered
        tile = _pick_tile(bc, per_row, kt_bytes, self._vmem_limit)

        cost = pl.CostEstimate(
            flops=2 * bc * HW * P,
            transcendentals=0,
            bytes_accessed=bc * HW * itemsize + bc * P * itemsize + HW * P * 4,
        )
        out_flat = pl.pallas_call(
            _spatial_neck_kernel,
            out_shape=jax.ShapeDtypeStruct((bc, P), x.dtype),
            grid_spec=pltpu.PrefetchScalarGridSpec(
                num_scalar_prefetch=0,
                grid=(pl.cdiv(bc, tile),),
                in_specs=[
                    pl.BlockSpec((tile, HW), lambda i: (i, 0)),
                    pl.BlockSpec((HW, P), lambda i: (0, 0),
                                 pipeline_mode=pl.Buffered(1)),
                ],
                out_specs=pl.BlockSpec((tile, P), lambda i: (i, 0)),
            ),
            compiler_params=pltpu.CompilerParams(
                dimension_semantics=("parallel",),
                vmem_limit_bytes=self._vmem_limit,
            ),
            cost_estimate=cost,
        )(x_flat, kt)
        return out_flat.reshape(B, C, ho, wo)

    def __call__(self, tokens):
        align_features = []
        for token in tokens:
            if token.ndim == 3:
                align_features.append(self._resize_tokens(token))
            else:
                align_features.append(self._resize_spatial(token))
        return align_features


# ---------------------------------------------------------------------------
# Pure-JAX reference (separable bilinear, align_corners=True) for checks
# ---------------------------------------------------------------------------
def _bilinear_ref(x_nchw, out_h, out_w):
    ah = jnp.asarray(_interp_matrix_np(out_h, x_nchw.shape[2]))
    aw = jnp.asarray(_interp_matrix_np(out_w, x_nchw.shape[3]))
    return jnp.einsum(
        "ph,bchw,qw->bcpq", ah, x_nchw.astype(jnp.float32), aw
    ).astype(x_nchw.dtype)


if __name__ == "__main__":
    key = jax.random.PRNGKey(0)
    k0, k1, k2 = jax.random.split(key, 3)

    # Synthetic clip_model.token_size: target = 16.
    token_size = [8, 16, 8]
    B, C = 2, 32
    target = max(token_size)

    # Level 0: transformer tokens (B, 1 + 8*8, C) -> fused CLS-drop /
    #          transpose / resize token kernel.
    tok0 = jax.random.normal(k0, (B, 8 * 8 + 1, C), dtype=jnp.float32)
    # Level 1: NCHW map already at the target size -> pure pass-through.
    tok1 = jax.random.normal(k1, (B, C, 16, 16), dtype=jnp.float32)
    # Level 2: NCHW map at 8x8 -> flattened-spatial kron kernel.
    tok2 = jax.random.normal(k2, (B, C, 8, 8), dtype=jnp.float32)

    necker = NeckerPallas(token_size)
    outs = necker([tok0, tok1, tok2])
    outs = [jax.block_until_ready(o) for o in outs]

    assert all(o.shape == (B, C, target, target) for o in outs)

    # Reference checks.
    tok0_nchw = tok0[:, 1:, :].reshape(B, 8, 8, C).transpose(0, 3, 1, 2)
    ref0 = _bilinear_ref(tok0_nchw, target, target)
    ref2 = _bilinear_ref(tok2, target, target)
    assert jnp.allclose(outs[0], ref0, atol=1e-4, rtol=1e-4)
    assert jnp.allclose(outs[1], tok1)  # exact pass-through (no kernel)
    assert jnp.allclose(outs[2], ref2, atol=1e-4, rtol=1e-4)

    print("KERNEL_OK")
</pallas_src>

<mosaic_0001>
module attributes {stable_mosaic.version = 11 : i64} {
  func.func @_token_neck_kernel(%arg0: i32, %arg1: i32, %arg2: memref<1x65x32xf32, #tpu.memory_space<vmem>>, %arg3: memref<65x256xf32, #tpu.memory_space<vmem>>, %arg4: memref<1x32x256xf32, #tpu.memory_space<vmem>>) attributes {dimension_semantics = [#tpu.dimension_semantics<parallel>, #tpu.dimension_semantics<parallel>], iteration_bounds = array<i64: 2, 1>, scalar_prefetch = 0 : i64, scratch_operands = 0 : i64, tpu.core_type = #tpu.core_type<tc>, window_params = [{transform_indices = @transform_0, window_bounds = array<i64: 1, 65, 32>}, {pipeline_mode = #tpu.pipeline_mode<synchronous>, transform_indices = @transform_1, window_bounds = array<i64: 65, 256>}, {transform_indices = @transform_2, window_bounds = array<i64: 1, 32, 256>}]} {
    %c0 = arith.constant 0 : index
    %c0_0 = arith.constant 0 : index
    %c0_1 = arith.constant 0 : index
    %0 = vector.load %arg2[%c0, %c0_0, %c0_1] : memref<1x65x32xf32, #tpu.memory_space<vmem>>, vector<1x65x32xf32>
    %1 = vector.shape_cast %0 : vector<1x65x32xf32> to vector<65x32xf32>
    %c0_2 = arith.constant 0 : index
    %c0_3 = arith.constant 0 : index
    %2 = vector.load %arg3[%c0_2, %c0_3] : memref<65x256xf32, #tpu.memory_space<vmem>>, vector<65x256xf32>
    %cst = arith.constant dense<0.000000e+00> : vector<32x256xf32>
    %3 = tpu.matmul %1, %2, %cst {dimension_numbers = #tpu.dot_dimension_numbers<[0], [0], [1], [1], [0, 1, 1, 1], [], []>} : vector<65x32xf32>, vector<65x256xf32>, vector<32x256xf32> -> vector<32x256xf32>
    %c0_4 = arith.constant 0 : index
    %c0_5 = arith.constant 0 : index
    %c0_6 = arith.constant 0 : index
    %4 = vector.load %arg4[%c0_4, %c0_5, %c0_6] : memref<1x32x256xf32, #tpu.memory_space<vmem>>, vector<1x32x256xf32>
    %5 = vector.shape_cast %4 : vector<1x32x256xf32> to vector<32x256xf32>
    %6 = vector.shape_cast %3 : vector<32x256xf32> to vector<1x32x256xf32>
    tpu.vector_store %arg4[%c0_4, %c0_5, %c0_6], %6 {strides = array<i32>} : memref<1x32x256xf32, #tpu.memory_space<vmem>>, vector<1x32x256xf32>,
    return
  }
  func.func @transform_0(%arg0: i32, %arg1: i32) -> (i32, i32, i32) {
    %c0_i32 = arith.constant 0 : i32
    %c0_i32_0 = arith.constant 0 : i32
    return %arg0, %c0_i32, %arg1 : i32, i32, i32
  }
  func.func @transform_1(%arg0: i32, %arg1: i32) -> (i32, i32) {
    %c0_i32 = arith.constant 0 : i32
    %c0_i32_0 = arith.constant 0 : i32
    %c0_i32_1 = arith.constant 0 : i32
    return %c0_i32, %c0_i32_0 : i32, i32
  }
  func.func @transform_2(%arg0: i32, %arg1: i32) -> (i32, i32, i32) {
    %c0_i32 = arith.constant 0 : i32
    %c0_i32_0 = arith.constant 0 : i32
    return %arg0, %arg1, %c0_i32 : i32, i32, i32
  }
}

</mosaic_0001>

<llo_original>
// kernel: tpu_custom_call.1
$region0: #{tpu_custom_call.1}
  #allocation0 [shape = 'u32[]', space=smem, size = 0x4, offset = 0x4, fixed_abs, tag = 'smem constant byte address 0x4 - core index']
  #allocation1 [shape = 'u32[72,128]{1,0:T(1,128)}', space=vmem, size = 0x9000, scoped, tag = 'internal scratch']
  %s0 = inlined_call_operand.vmem [shape: f32[2,65,32], index: 0, kind: input, shape index: {}]
  %s1 = inlined_call_operand.vmem [shape: f32[65,256], index: 1, kind: input, shape index: {}]
  %s2 = inlined_call_operand.hbm [shape: f32[2,32,256], index: 2, kind: output, shape index: {}]
  %s3 = sld [smem:[#allocation0]]
  $region41: #{tpu_custom_call.1} parent=0
    _
  %s5 = ssub.s32 1, %s3
  %s6 = scalar_select 0, %s5, %s3
  $region1: #{tpu_custom_call.1} parent=0
    #allocation2 [shape = 'u8[65536]{0}', space=vmem, size = 0x10000, scoped, tag = 'output window, operand 0']
    #allocation3 [shape = 's32[2]{0}', space=sflag, size = 0x8, scoped, tag = 'scoped memory for tpu_custom_call.1']
    %7 = vsyncpa [#allocation3], 0
    %s8 = scalar_lea.sflag [#allocation3], 1
    %9 = vsyncpa %s8, 0
    loop: start=0, step=1, limit=4
    $region2: #{tpu_custom_call.1} parent=1 // loop_pre_header
      _
    $region3: #{tpu_custom_call.1} parent=1 // loop_header
      %s11 = sphi 0, %s15
      %p12 = scmp.ge.s32.totalorder %s11, 4
      %s18 = sphi 0, %s30
      %s19 = sphi 0, %s26
      %s20 = sphi 0, %s18
      %s21 = sphi 0, %s19
      %s22 = sphi 0, %s20
      %s23 = sphi 0, %s21
      %s35 = sphi 0, %s37
      %s38 = sphi 0, %s35
      %s39 = sphi 0, %s38
      %s55 = sphi 0, %s39
      %s59 = sphi 0, %s59
      %s61 = sphi 0, %s59
      %s62 = sphi 0, %s61
      %s76 = sphi 0, %s62
      %s84 = sphi 0, %s86
      %s87 = sphi 0, %s84
      %s88 = sphi 0, %s87
      %s104 = sphi 0, %s88
    $region4: #{tpu_custom_call.1} parent=1 // loop_header_branch
      %14 = sbr.rel (%p12) target = $region8
    $region5: #{tpu_custom_call.1} parent=1 // loop_body
      %s16 = ssub.s32 %s11, 1
      %s17 = ssub.s32 %s11, 2
      %s24 = sadd.s32 1, %s19
      %p25 = scmp.ge.s32.totalorder %s24, 1
      %s26 = scalar_select %p25, 0, %s24
      %s27 = sadd.s32 1, %s18
      %s28 = scalar_select %p25, %s27, %s18
      %p29 = scmp.ge.s32.totalorder %s28, 2
      %s30 = scalar_select %p29, 0, %s28
      %s31 = ssub.s32 %s18, %s30
      %s32 = ssub.s32 %s19, %s26
      %s33 = sor.u32 %s31, %s32
      %p34 = scmp.eq.s32.totalorder %s33, 0
      %s36 = sadd.s32 %s35, 1
      %s37 = scalar_select %p34, %s35, %s36
      %p40 = pneg %p34
      %p41 = scmp.eq.s32.totalorder %s11, 1
      %p42 = por %p40, %p41
      %p43 = scmp.ne.s32.totalorder %s35, %s38
      %p44 = scmp.eq.s32.totalorder %s11, 0
      %p45 = por %p43, %p44
      %p46 = scmp.ne.s32.totalorder %s35, %s38
      %p47 = scmp.eq.s32.totalorder %s16, 1
      %p48 = por %p46, %p47
      %p49 = scmp.ne.s32.totalorder %s38, %s39
      %p50 = scmp.eq.s32.totalorder %s16, 0
      %p51 = por %p49, %p50
      %p52 = scmp.ne.s32.totalorder %s38, %s39
      %p53 = scmp.eq.s32.totalorder %s17, 1
      %p54 = por %p52, %p53
      %p56 = scmp.ne.s32.totalorder %s39, %s55
      %p57 = scmp.eq.s32.totalorder %s17, 0
      %p58 = por %p56, %p57
      %s60 = sadd.s32 %s59, 1
      %p63 = scmp.eq.s32.totalorder %s11, 1
      %p64 = scmp.ne.s32.totalorder %s59, %s61
      %p65 = scmp.eq.s32.totalorder %s11, 0
      %p66 = por %p64, %p65
      %p67 = scmp.ne.s32.totalorder %s59, %s61
      %p68 = scmp.eq.s32.totalorder %s16, 1
      %p69 = por %p67, %p68
      %p70 = scmp.ne.s32.totalorder %s61, %s62
      %p71 = scmp.eq.s32.totalorder %s16, 0
      %p72 = por %p70, %p71
      %p73 = scmp.ne.s32.totalorder %s61, %s62
      %p74 = scmp.eq.s32.totalorder %s17, 1
      %p75 = por %p73, %p74
      %p77 = scmp.ne.s32.totalorder %s62, %s76
      %p78 = scmp.eq.s32.totalorder %s17, 0
      %p79 = por %p77, %p78
      %s80 = ssub.s32 %s18, %s30
      %s81 = ssub.s32 %s19, %s26
      %s82 = sor.u32 %s80, %s81
      %p83 = scmp.eq.s32.totalorder %s82, 0
      %s85 = sadd.s32 %s84, 1
      %s86 = scalar_select %p83, %s84, %s85
      %p89 = pneg %p83
      %p90 = scmp.eq.s32.totalorder %s11, 1
      %p91 = por %p89, %p90
      %p92 = scmp.ne.s32.totalorder %s84, %s87
      %p93 = scmp.eq.s32.totalorder %s11, 0
      %p94 = por %p92, %p93
      %p95 = scmp.ne.s32.totalorder %s84, %s87
      %p96 = scmp.eq.s32.totalorder %s16, 1
      %p97 = por %p95, %p96
      %p98 = scmp.ne.s32.totalorder %s87, %s88
      %p99 = scmp.eq.s32.totalorder %s16, 0
      %p100 = por %p98, %p99
      %p101 = scmp.ne.s32.totalorder %s87, %s88
      %p102 = scmp.eq.s32.totalorder %s17, 1
      %p103 = por %p101, %p102
      %p105 = scmp.ne.s32.totalorder %s88, %s104
      %p106 = scmp.eq.s32.totalorder %s17, 0
      %p107 = por %p105, %p106
      %p108 = scmp.le.s32.totalorder 1, %s11
      %p109 = scmp.lt.s32.totalorder %s11, 3
      %p110 = pnand %p108, %p109
      %p111 = pneg %p110
      // Predicated region
      $region9: #{tpu_custom_call.1} parent=5 // pred_check
        _
      $region10: #{tpu_custom_call.1} parent=5 // pred_check_branch
        %113 = sbr.rel (%p110) target = $region12
      $region11: #{tpu_custom_call.1} parent=5 // pred_region
        %s114 = ssub.s32 %s11, 1
        // Predicated region
        $region13: #{tpu_custom_call.1} parent=11 // pred_check
          %p115 = pneg %p72
        $region14: #{tpu_custom_call.1} parent=11 // pred_check_branch
          %117 = sbr.rel (%p115) target = $region16
        $region15: #{tpu_custom_call.1} parent=11 // pred_region
          _
        $region16: #{tpu_custom_call.1} parent=11 // pred_fallthru
          _
      $region12: #{tpu_custom_call.1} parent=5 // pred_fallthru
        _
      %p118 = scmp.lt.s32.totalorder %s11, 2
      // Predicated region
      $region17: #{tpu_custom_call.1} parent=5 // pred_check
        %p119 = pneg %p118
      $region18: #{tpu_custom_call.1} parent=5 // pred_check_branch
        %121 = sbr.rel (%p119) target = $region20
      $region19: #{tpu_custom_call.1} parent=5 // pred_region
        // Predicated region
        $region21: #{tpu_custom_call.1} parent=19 // pred_check
          %p122 = pneg %p45
        $region22: #{tpu_custom_call.1} parent=19 // pred_check_branch
          %124 = sbr.rel (%p122) target = $region24
        $region23: #{tpu_custom_call.1} parent=19 // pred_region
          %p125 = scmp.lt.s32.totalorder %s18, 1
          %s126 = scalar_select %p125, %s18, 1
          %p127 = scmp.lt.s32.totalorder %s19, 0
          %s128 = scalar_select %p127, %s19, 0
          %s129 = smul.addr %s126, 9
          %s130 = sadd.s32 %s128, %s129
          %s131 = smul.addr %s130, 8
          %s132 = scalar_lea.vmem %s0, %s131
        $region24: #{tpu_custom_call.1} parent=19 // pred_fallthru
          _
      $region20: #{tpu_custom_call.1} parent=5 // pred_fallthru
        _
      %p133 = scmp.le.s32.totalorder 1, %s11
      %p134 = scmp.lt.s32.totalorder %s11, 3
      %p135 = pnand %p133, %p134
      %p136 = pneg %p135
      // Predicated region
      $region25: #{tpu_custom_call.1} parent=5 // pred_check
        _
      $region26: #{tpu_custom_call.1} parent=5 // pred_check_branch
        %138 = sbr.rel (%p135) target = $region28
      $region27: #{tpu_custom_call.1} parent=5 // pred_region
        %s139 = ssub.s32 %s11, 1
        %p140 = scmp.lt.s32.totalorder %s20, 1
        %s141 = scalar_select %p140, %s20, 1
        %p142 = scmp.lt.s32.totalorder %s21, 0
        %s143 = scalar_select %p142, %s21, 0
        %s144 = smul.addr %s141, 9
        %s145 = sadd.s32 %s143, %s144
        %s146 = smul.addr %s145, 8
        %s147 = scalar_lea.vmem %s0, %s146
        %p148 = pneg %p51
        %p149 = pneg %p48
        %p150 = pneg %p72
        %p151 = pneg %p69
        %p152 = pneg %p100
        %p153 = pneg %p97
        %s154 = sand.u32 %s87, 1
        %s155 = scalar_lea.sflag [#allocation3], %s154
        %s156 = sand.u32 %s87, 1
        %s157 = smul.addr %s156, 64
        %s158 = scalar_lea.vmem [#allocation2], %s157
        %p159 = scmp.lt.s32.totalorder %s20, 1
        %s160 = scalar_select %p159, %s20, 1
        %p161 = scmp.lt.s32.totalorder %s21, 0
        %s162 = scalar_select %p161, %s21, 0
        %s163 = smul.addr %s160, 9
        %s164 = sadd.s32 %s162, %s163
        %s165 = smul.addr %s164, 8
        %s166 = scalar_lea.vmem %s0, %s165
        %s167 = smul.u32 4, %s21
        %v168 = vld [vmem:[%s166] sm:$0xff]
        %v169 = vld [vmem:[%s166 + $0x8] sm:$0xff]
        %v170 = vld [vmem:[%s166 + $0x10] sm:$0xff]
        %v171 = vld [vmem:[%s166 + $0x18] sm:$0xff]
        %v172 = vld [vmem:[%s166 + $0x20] sm:$0xff]
        %v173 = vld [vmem:[%s166 + $0x28] sm:$0xff]
        %v174 = vld [vmem:[%s166 + $0x30] sm:$0xff]
        %v175 = vld [vmem:[%s166 + $0x38] sm:$0xff]
        %v176 = vld [vmem:[%s166 + $0x40] sm:$0x1]
        %v177 = vld [vmem:[%s1] sm:$0xff]
        %v178 = vld [vmem:[%s1 + $0x8] sm:$0xff]
        %v179 = vld [vmem:[%s1 + $0x10] sm:$0xff]
        %v180 = vld [vmem:[%s1 + $0x18] sm:$0xff]
        %v181 = vld [vmem:[%s1 + $0x20] sm:$0xff]
        %v182 = vld [vmem:[%s1 + $0x28] sm:$0xff]
        %v183 = vld [vmem:[%s1 + $0x30] sm:$0xff]
        %v184 = vld [vmem:[%s1 + $0x38] sm:$0xff]
        %v185 = vld [vmem:[%s1 + $0x40] sm:$0xff]
        %v186 = vld [vmem:[%s1 + $0x48] sm:$0xff]
        %v187 = vld [vmem:[%s1 + $0x50] sm:$0xff]
        %v188 = vld [vmem:[%s1 + $0x58] sm:$0xff]
        %v189 = vld [vmem:[%s1 + $0x60] sm:$0xff]
        %v190 = vld [vmem:[%s1 + $0x68] sm:$0xff]
        %v191 = vld [vmem:[%s1 + $0x70] sm:$0xff]
        %v192 = vld [vmem:[%s1 + $0x78] sm:$0xff]
        %v193 = vld [vmem:[%s1 + $0x80] sm:$0x1]
        %v194 = vld [vmem:[%s1 + $0x88] sm:$0x1]
        %195 = vxpose.xlu0.b32.start [1/16] %v168, 128
        %196 = vxpose.xlu0.b32.cont [2/16] %v169, 128
        %197 = vxpose.xlu0.b32.cont [3/16] %v170, 128
        %198 = vxpose.xlu0.b32.cont [4/16] %v171, 128
        %199 = vxpose.xlu0.b32.cont [5/16] %v172, 128
        %200 = vxpose.xlu0.b32.cont [6/16] %v173, 128
        %201 = vxpose.xlu0.b32.cont [7/16] %v174, 128
        %202 = vxpose.xlu0.b32.cont [8/16] %v175, 128
        %203 = vxpose.xlu0.b32.cont [9/16] %v176, 128
        %204 = vxpose.xlu0.b32.cont [10/16] 0.0, 128
        %205 = vxpose.xlu0.b32.cont [11/16] 0.0, 128
        %206 = vxpose.xlu0.b32.cont [12/16] 0.0, 128
        %207 = vxpose.xlu0.b32.cont [13/16] 0.0, 128
        %208 = vxpose.xlu0.b32.cont [14/16] 0.0, 128
        %209 = vxpose.xlu0.b32.cont [15/16] 0.0, 128
        %210 = vxpose.xlu0.b32.end [16/16] 0.0, 128
        %v211 = vpop.trf.xlu0
        %v212 = vpop.trf.xlu0
        %v213 = vpop.trf.xlu0
        %v214 = vpop.trf.xlu0
        %v215 = vpop.trf.xlu0
        %v216 = vpop.trf.xlu0
        %v217 = vpop.trf.xlu0
        %v218 = vpop.trf.xlu0
        %v219 = vpop.trf.xlu0
        %v220 = vpop.trf.xlu0
        %v221 = vpop.trf.xlu0
        %v222 = vpop.trf.xlu0
        %v223 = vpop.trf.xlu0
        %v224 = vpop.trf.xlu0
        %v225 = vpop.trf.xlu0
        %v226 = vpop.trf.xlu0
        %vm227 = vcmask 531456
        %v229 = vsel %vm227, %v211, 0
        %v232 = vsel %vm227, %v212, 0
        %v235 = vsel %vm227, %v213, 0
        %v238 = vsel %vm227, %v214, 0
        %vm240 = vcmask 1040384
        %v242 = vsel %vm240, %v193, 0
        %v245 = vsel %vm240, %v194, 0
        %247 = vmatpush.msra.mxu0 0.0
        %248 = vmatpush.msra.mxu0 0.0
        %249 = vmatpush.msra.mxu0 0.0
        %250 = vmatpush.msra.mxu0 0.0
        %251 = vmatpush.msra.mxu0 0.0
        %252 = vmatpush.msra.mxu0 0.0
        %253 = vmatpush.msra.mxu0 0.0
        %254 = vmatpush.msra.mxu0 %v242
        %255 = vmatpush.msra.mxu0 %v191
        %256 = vmatpush.msra.mxu0 %v189
        %257 = vmatpush.msra.mxu0 %v187
        %258 = vmatpush.msra.mxu0 %v185
        %259 = vmatpush.msra.mxu0 %v183
        %260 = vmatpush.msra.mxu0 %v181
        %261 = vmatpush.msra.mxu0 %v179
        %262 = vmatpush.msra.mxu0 %v177
        %263 = vmatmul.f32.gmra.mxu0 %v229
        %v264 = vpop.f32.mrf.mxu0
        %v265 = vadd.f32 0.0, %v264
        %266 = vmatmul.f32.gmra.mxu0 %v232
        %v267 = vpop.f32.mrf.mxu0
        %v268 = vadd.f32 0.0, %v267
        %269 = vmatmul.f32.gmra.mxu0 %v235
        %v270 = vpop.f32.mrf.mxu0
        %v271 = vadd.f32 0.0, %v270
        %272 = vmatmul.f32.gmra.mxu0 %v238
        %v273 = vpop.f32.mrf.mxu0
        %v274 = vadd.f32 0.0, %v273
        %275 = vdwg.mxu0
        %276 = vmatpush.msra.mxu0 0.0
        %277 = vmatpush.msra.mxu0 0.0
        %278 = vmatpush.msra.mxu0 0.0
        %279 = vmatpush.msra.mxu0 0.0
        %280 = vmatpush.msra.mxu0 0.0
        %281 = vmatpush.msra.mxu0 0.0
        %282 = vmatpush.msra.mxu0 0.0
        %283 = vmatpush.msra.mxu0 %v245
        %284 = vmatpush.msra.mxu0 %v192
        %285 = vmatpush.msra.mxu0 %v190
        %286 = vmatpush.msra.mxu0 %v188
        %287 = vmatpush.msra.mxu0 %v186
        %288 = vmatpush.msra.mxu0 %v184
        %289 = vmatpush.msra.mxu0 %v182
        %290 = vmatpush.msra.mxu0 %v180
        %291 = vmatpush.msra.mxu0 %v178
        %292 = vmatmul.f32.gmra.mxu0 %v229
        %v293 = vpop.f32.mrf.mxu0
        %v294 = vadd.f32 0.0, %v293
        %295 = vmatmul.f32.gmra.mxu0 %v232
        %v296 = vpop.f32.mrf.mxu0
        %v297 = vadd.f32 0.0, %v296
        %298 = vmatmul.f32.gmra.mxu0 %v235
        %v299 = vpop.f32.mrf.mxu0
        %v300 = vadd.f32 0.0, %v299
        %301 = vmatmul.f32.gmra.mxu0 %v238
        %v302 = vpop.f32.mrf.mxu0
        %v303 = vadd.f32 0.0, %v302
        %304 = vdwg.mxu0
        %305 = vst [vmem:[%s158] sm:$0xff] %v265
        %306 = vst [vmem:[%s158 + $0x8] sm:$0xff] %v294
        %307 = vst [vmem:[%s158 + $0x10] sm:$0xff] %v268
        %308 = vst [vmem:[%s158 + $0x18] sm:$0xff] %v297
        %309 = vst [vmem:[%s158 + $0x20] sm:$0xff] %v271
        %310 = vst [vmem:[%s158 + $0x28] sm:$0xff] %v300
        %311 = vst [vmem:[%s158 + $0x30] sm:$0xff] %v274
        %312 = vst [vmem:[%s158 + $0x38] sm:$0xff] %v303
        %s313 = sand.u32 %s87, 1
        %s314 = scalar_lea.sflag [#allocation3], %s313
        %s315 = sand.u32 %s87, 1
        %s316 = smul.addr %s315, 64
        %s317 = scalar_lea.vmem [#allocation2], %s316
        // Predicated region
        $region29: #{tpu_custom_call.1} parent=27 // pred_check
          %p318 = pneg %p97
        $region30: #{tpu_custom_call.1} parent=27 // pred_check_branch
          %320 = sbr.rel (%p318) target = $region32
        $region31: #{tpu_custom_call.1} parent=27 // pred_region
          %s321 = smul.u32 4, %s21
          %323 = vsyncadd %s314, 0
          %s324 = smul.addr %s321, 2
          %s325 = smul.addr %s20, 8
          %s326 = sadd.s32 %s324, %s325
          %s327 = smul.addr %s326, 8
          %s328 = scalar_lea.hbm %s2, %s327
          %s329 = sshll.u32 %s317, 4
          %s330 = int_to_ptr.vmem [resolvable:$true] %s329
          %s331 = sshll.u32 %s328, 4
          %s332 = int_to_ptr.hbm [resolvable:$true] %s331
          %337 = dma.vmem_to_hbm [thread:$0]  %s330, 1024, %s332, %s314, 256, 256, 16
        $region32: #{tpu_custom_call.1} parent=27 // pred_fallthru
          _
      $region28: #{tpu_custom_call.1} parent=5 // pred_fallthru
        _
      %p338 = scmp.le.s32.totalorder 2, %s11
      // Predicated region
      $region33: #{tpu_custom_call.1} parent=5 // pred_check
        %p339 = pneg %p338
      $region34: #{tpu_custom_call.1} parent=5 // pred_check_branch
        %341 = sbr.rel (%p339) target = $region36
      $region35: #{tpu_custom_call.1} parent=5 // pred_region
        %s342 = ssub.s32 %s11, 2
        // Predicated region
        $region37: #{tpu_custom_call.1} parent=35 // pred_check
          %p343 = pneg %p103
        $region38: #{tpu_custom_call.1} parent=35 // pred_check_branch
          %345 = sbr.rel (%p343) target = $region40
        $region39: #{tpu_custom_call.1} parent=35 // pred_region
          %s346 = sand.u32 %s88, 1
          %s347 = scalar_lea.sflag [#allocation3], %s346
          %s348 = sand.u32 %s88, 1
          %s349 = smul.addr %s348, 64
          %s350 = scalar_lea.vmem [#allocation2], %s349
          %352 = dma.done %s347, 1024
        $region40: #{tpu_custom_call.1} parent=35 // pred_fallthru
          _
      $region36: #{tpu_custom_call.1} parent=5 // pred_fallthru
        _
    $region6: #{tpu_custom_call.1} parent=1 // loop_footer
      %s15 = sadd.s32 1, %s11
    $region7: #{tpu_custom_call.1} parent=1 // loop_footer_branch
      %10 = sbr.rel target = $region3
    $region8: #{tpu_custom_call.1} parent=1 // loop_exit
      _
    %353 = vsyncpa [#allocation3], 1
    %s354 = scalar_lea.sflag [#allocation3], 1
    %355 = vsyncpa %s354, 1

</llo_original>
